<compile_context>
chip_gen: v5e
topology: v5e:2x2
jax: 0.10.0
libtpu: 0.0.40
codegen_flags: <defaults>
</compile_context>

<pallas_src>
import jax
import jax.numpy as jnp
from jax.experimental import pallas as pl
from jax.experimental.pallas import tpu as pltpu

# Small synthetic opts: irnnDim=16 -> input dim 32, numClasses=16 -> output 32.
IRNN_DIM = 16
EMB_DIM = IRNN_DIM * 2          # opts.irnnDim * 2
NUM_CLASSES = 16
OUT_DIM = NUM_CLASSES * 2       # opts.numClasses * 2
HID1 = 512
HID2 = 256
NEG_SLOPE = 0.2

TILE_M_MAX = 1024               # batch tile (rows); ~5 MiB live VMEM per step


def _leaky_relu(v):
    return jnp.where(v > 0, v, NEG_SLOPE * v)


def _round_up(n, m):
    return ((n + m - 1) // m) * m


def mlp_kernel(x_ref, w1_ref, b1_ref, w2_ref, b2_ref, w3_ref, b3_ref, out_ref):
    # bf16 weights / activations into the MXU, f32 accumulation.
    x = x_ref[...].astype(jnp.bfloat16)

    h = jnp.dot(x, w1_ref[...], preferred_element_type=jnp.float32) + b1_ref[...]
    h = _leaky_relu(h.astype(jnp.bfloat16))           # bf16 VALU on v6e/v7x

    h = jnp.dot(h, w2_ref[...], preferred_element_type=jnp.float32) + b2_ref[...]
    h = _leaky_relu(h.astype(jnp.bfloat16))

    out_ref[...] = jnp.dot(h, w3_ref[...],
                           preferred_element_type=jnp.float32) + b3_ref[...]


@jax.jit
def text_emb_discriminator_forward(features, params):
    w1, b1, w2, b2, w3, b3 = params
    batch = features.shape[0]

    # Pad batch to a sublane-friendly multiple of 8; tile it so large batches
    # stream through the grid while weights stay VMEM-resident.
    padded8 = _round_up(batch, 8)
    if padded8 <= TILE_M_MAX:
        tile_m = padded8
        padded_batch = padded8
    else:
        tile_m = TILE_M_MAX
        padded_batch = _round_up(batch, TILE_M_MAX)

    if padded_batch != batch:
        features = jnp.pad(features, ((0, padded_batch - batch), (0, 0)))

    grid = (padded_batch // tile_m,)

    def resident(shape):
        # Constant block index + single buffer: DMA'd once, stays in VMEM.
        return pl.BlockSpec(shape, lambda i: (0, 0),
                            pipeline_mode=pl.Buffered(1))

    out = pl.pallas_call(
        mlp_kernel,
        out_shape=jax.ShapeDtypeStruct((padded_batch, OUT_DIM), jnp.float32),
        grid=grid,
        in_specs=[
            pl.BlockSpec((tile_m, EMB_DIM), lambda i: (i, 0)),   # x tile
            resident((EMB_DIM, HID1)), resident((1, HID1)),
            resident((HID1, HID2)), resident((1, HID2)),
            resident((HID2, OUT_DIM)), resident((1, OUT_DIM)),
        ],
        out_specs=pl.BlockSpec((tile_m, OUT_DIM), lambda i: (i, 0)),
        compiler_params=pltpu.CompilerParams(
            dimension_semantics=("parallel",),
            vmem_limit_bytes=32 << 20),
    )(features, w1, b1, w2, b2, w3, b3)

    return out[:batch]


def init_params(key):
    """Mirror nn.Linear's U(-1/sqrt(fan_in), 1/sqrt(fan_in)); bf16 weights."""
    def linear(k, fan_in, fan_out):
        kw, kb = jax.random.split(k)
        bound = 1.0 / jnp.sqrt(fan_in)
        w = jax.random.uniform(kw, (fan_in, fan_out), jnp.float32, -bound, bound)
        b = jax.random.uniform(kb, (1, fan_out), jnp.float32, -bound, bound)
        return w.astype(jnp.bfloat16), b

    k1, k2, k3 = jax.random.split(key, 3)
    w1, b1 = linear(k1, EMB_DIM, HID1)
    w2, b2 = linear(k2, HID1, HID2)
    w3, b3 = linear(k3, HID2, OUT_DIM)
    return (w1, b1, w2, b2, w3, b3)


def reference_forward(features, params):
    """Pure-JAX reference with identical bf16/f32 mixed precision."""
    w1, b1, w2, b2, w3, b3 = params
    x = features.astype(jnp.bfloat16)
    h = jnp.dot(x, w1, preferred_element_type=jnp.float32) + b1
    h = _leaky_relu(h.astype(jnp.bfloat16))
    h = jnp.dot(h, w2, preferred_element_type=jnp.float32) + b2
    h = _leaky_relu(h.astype(jnp.bfloat16))
    return jnp.dot(h, w3, preferred_element_type=jnp.float32) + b3


if __name__ == "__main__":
    key = jax.random.PRNGKey(0)
    k_params, k_x = jax.random.split(key)
    params = init_params(k_params)

    batch = 8
    features = jax.random.normal(k_x, (batch, EMB_DIM), jnp.float32)

    out = text_emb_discriminator_forward(features, params)
    jax.block_until_ready(out)

    ref = reference_forward(features, params)
    assert out.shape == (batch, OUT_DIM)
    assert jnp.allclose(out, ref, atol=1e-3, rtol=1e-3)

    print("KERNEL_OK")
</pallas_src>

<mosaic_0001>
module attributes {stable_mosaic.version = 11 : i64} {
  func.func @mlp_kernel(%arg0: i32, %arg1: memref<8x32xf32, #tpu.memory_space<vmem>>, %arg2: memref<32x512xbf16, #tpu.memory_space<vmem>>, %arg3: memref<1x512xf32, #tpu.memory_space<vmem>>, %arg4: memref<512x256xbf16, #tpu.memory_space<vmem>>, %arg5: memref<1x256xf32, #tpu.memory_space<vmem>>, %arg6: memref<256x32xbf16, #tpu.memory_space<vmem>>, %arg7: memref<1x32xf32, #tpu.memory_space<vmem>>, %arg8: memref<8x32xf32, #tpu.memory_space<vmem>>) attributes {dimension_semantics = [#tpu.dimension_semantics<parallel>], iteration_bounds = array<i64: 1>, scalar_prefetch = 0 : i64, scratch_operands = 0 : i64, tpu.core_type = #tpu.core_type<tc>, window_params = [{transform_indices = @transform_0, window_bounds = array<i64: 8, 32>}, {pipeline_mode = #tpu.pipeline_mode<synchronous>, transform_indices = @transform_1, window_bounds = array<i64: 32, 512>}, {pipeline_mode = #tpu.pipeline_mode<synchronous>, transform_indices = @transform_2, window_bounds = array<i64: 1, 512>}, {pipeline_mode = #tpu.pipeline_mode<synchronous>, transform_indices = @transform_3, window_bounds = array<i64: 512, 256>}, {pipeline_mode = #tpu.pipeline_mode<synchronous>, transform_indices = @transform_4, window_bounds = array<i64: 1, 256>}, {pipeline_mode = #tpu.pipeline_mode<synchronous>, transform_indices = @transform_5, window_bounds = array<i64: 256, 32>}, {pipeline_mode = #tpu.pipeline_mode<synchronous>, transform_indices = @transform_6, window_bounds = array<i64: 1, 32>}, {transform_indices = @transform_7, window_bounds = array<i64: 8, 32>}]} {
    %c0 = arith.constant 0 : index
    %c0_0 = arith.constant 0 : index
    %0 = vector.load %arg1[%c0, %c0_0] : memref<8x32xf32, #tpu.memory_space<vmem>>, vector<8x32xf32>
    %1 = arith.truncf %0 : vector<8x32xf32> to vector<8x32xbf16>
    %c0_1 = arith.constant 0 : index
    %c0_2 = arith.constant 0 : index
    %2 = vector.load %arg2[%c0_1, %c0_2] : memref<32x512xbf16, #tpu.memory_space<vmem>>, vector<32x512xbf16>
    %cst = arith.constant dense<0.000000e+00> : vector<8x512xf32>
    %3 = tpu.matmul %1, %2, %cst {dimension_numbers = #tpu.dot_dimension_numbers<[1], [0], [0], [1], [0, 0, 1, 1], [], []>} : vector<8x32xbf16>, vector<32x512xbf16>, vector<8x512xf32> -> vector<8x512xf32>
    %c0_3 = arith.constant 0 : index
    %c0_4 = arith.constant 0 : index
    %4 = vector.load %arg3[%c0_3, %c0_4] : memref<1x512xf32, #tpu.memory_space<vmem>>, vector<1x512xf32>
    %5 = vector.broadcast %4 : vector<1x512xf32> to vector<8x512xf32>
    %6 = arith.addf %3, %5 : vector<8x512xf32>
    %7 = arith.truncf %6 : vector<8x512xf32> to vector<8x512xbf16>
    %cst_5 = arith.constant 0.000000e+00 : bf16
    %8 = vector.broadcast %cst_5 : bf16 to vector<8x512xbf16>
    %9 = arith.cmpf ogt, %7, %8 : vector<8x512xbf16>
    %cst_6 = arith.constant 2.001950e-01 : bf16
    %10 = vector.broadcast %cst_6 : bf16 to vector<8x512xbf16>
    %11 = arith.mulf %10, %7 : vector<8x512xbf16>
    %12 = arith.select %9, %7, %11 : vector<8x512xi1>, vector<8x512xbf16>
    %c0_7 = arith.constant 0 : index
    %c0_8 = arith.constant 0 : index
    %13 = vector.load %arg4[%c0_7, %c0_8] : memref<512x256xbf16, #tpu.memory_space<vmem>>, vector<512x256xbf16>
    %cst_9 = arith.constant dense<0.000000e+00> : vector<8x256xf32>
    %14 = tpu.matmul %12, %13, %cst_9 {dimension_numbers = #tpu.dot_dimension_numbers<[1], [0], [0], [1], [0, 0, 1, 1], [], []>} : vector<8x512xbf16>, vector<512x256xbf16>, vector<8x256xf32> -> vector<8x256xf32>
    %c0_10 = arith.constant 0 : index
    %c0_11 = arith.constant 0 : index
    %15 = vector.load %arg5[%c0_10, %c0_11] : memref<1x256xf32, #tpu.memory_space<vmem>>, vector<1x256xf32>
    %16 = vector.broadcast %15 : vector<1x256xf32> to vector<8x256xf32>
    %17 = arith.addf %14, %16 : vector<8x256xf32>
    %18 = arith.truncf %17 : vector<8x256xf32> to vector<8x256xbf16>
    %cst_12 = arith.constant 0.000000e+00 : bf16
    %19 = vector.broadcast %cst_12 : bf16 to vector<8x256xbf16>
    %20 = arith.cmpf ogt, %18, %19 : vector<8x256xbf16>
    %cst_13 = arith.constant 2.001950e-01 : bf16
    %21 = vector.broadcast %cst_13 : bf16 to vector<8x256xbf16>
    %22 = arith.mulf %21, %18 : vector<8x256xbf16>
    %23 = arith.select %20, %18, %22 : vector<8x256xi1>, vector<8x256xbf16>
    %c0_14 = arith.constant 0 : index
    %c0_15 = arith.constant 0 : index
    %24 = vector.load %arg6[%c0_14, %c0_15] : memref<256x32xbf16, #tpu.memory_space<vmem>>, vector<256x32xbf16>
    %cst_16 = arith.constant dense<0.000000e+00> : vector<8x32xf32>
    %25 = tpu.matmul %23, %24, %cst_16 {dimension_numbers = #tpu.dot_dimension_numbers<[1], [0], [0], [1], [0, 0, 1, 1], [], []>} : vector<8x256xbf16>, vector<256x32xbf16>, vector<8x32xf32> -> vector<8x32xf32>
    %c0_17 = arith.constant 0 : index
    %c0_18 = arith.constant 0 : index
    %26 = vector.load %arg7[%c0_17, %c0_18] : memref<1x32xf32, #tpu.memory_space<vmem>>, vector<1x32xf32>
    %27 = vector.broadcast %26 : vector<1x32xf32> to vector<8x32xf32>
    %28 = arith.addf %25, %27 : vector<8x32xf32>
    %c0_19 = arith.constant 0 : index
    %c0_20 = arith.constant 0 : index
    %29 = vector.load %arg8[%c0_19, %c0_20] : memref<8x32xf32, #tpu.memory_space<vmem>>, vector<8x32xf32>
    tpu.vector_store %arg8[%c0_19, %c0_20], %28 {strides = array<i32>} : memref<8x32xf32, #tpu.memory_space<vmem>>, vector<8x32xf32>,
    return
  }
  func.func @transform_0(%arg0: i32) -> (i32, i32) {
    %c0_i32 = arith.constant 0 : i32
    %c0_i32_0 = arith.constant 0 : i32
    return %arg0, %c0_i32 : i32, i32
  }
  func.func @transform_1(%arg0: i32) -> (i32, i32) {
    %c0_i32 = arith.constant 0 : i32
    %c0_i32_0 = arith.constant 0 : i32
    %c0_i32_1 = arith.constant 0 : i32
    return %c0_i32, %c0_i32_0 : i32, i32
  }
  func.func @transform_2(%arg0: i32) -> (i32, i32) {
    %c0_i32 = arith.constant 0 : i32
    %c0_i32_0 = arith.constant 0 : i32
    %c0_i32_1 = arith.constant 0 : i32
    return %c0_i32, %c0_i32_0 : i32, i32
  }
  func.func @transform_3(%arg0: i32) -> (i32, i32) {
    %c0_i32 = arith.constant 0 : i32
    %c0_i32_0 = arith.constant 0 : i32
    %c0_i32_1 = arith.constant 0 : i32
    return %c0_i32, %c0_i32_0 : i32, i32
  }
  func.func @transform_4(%arg0: i32) -> (i32, i32) {
    %c0_i32 = arith.constant 0 : i32
    %c0_i32_0 = arith.constant 0 : i32
    %c0_i32_1 = arith.constant 0 : i32
    return %c0_i32, %c0_i32_0 : i32, i32
  }
  func.func @transform_5(%arg0: i32) -> (i32, i32) {
    %c0_i32 = arith.constant 0 : i32
    %c0_i32_0 = arith.constant 0 : i32
    %c0_i32_1 = arith.constant 0 : i32
    return %c0_i32, %c0_i32_0 : i32, i32
  }
  func.func @transform_6(%arg0: i32) -> (i32, i32) {
    %c0_i32 = arith.constant 0 : i32
    %c0_i32_0 = arith.constant 0 : i32
    %c0_i32_1 = arith.constant 0 : i32
    return %c0_i32, %c0_i32_0 : i32, i32
  }
  func.func @transform_7(%arg0: i32) -> (i32, i32) {
    %c0_i32 = arith.constant 0 : i32
    %c0_i32_0 = arith.constant 0 : i32
    return %arg0, %c0_i32 : i32, i32
  }
}

</mosaic_0001>

<llo_original>
// kernel: text_emb_discriminator_forward.1
$region0: #{text_emb_discriminator_forward.1}
  #allocation0 [shape = 'u32[]', space=smem, size = 0x4, offset = 0x4, fixed_abs, tag = 'smem constant byte address 0x4 - core index']
  #allocation1 [shape = 'u32[72,128]{1,0:T(1,128)}', space=vmem, size = 0x9000, scoped, tag = 'internal scratch']
  %s0 = inlined_call_operand.vmem [shape: f32[8,32], index: 0, kind: input, shape index: {}]
  %s1 = inlined_call_operand.vmem [shape: bf16[32,512], index: 1, kind: input, shape index: {}]
  %s2 = inlined_call_operand.vmem [shape: f32[1,512], index: 2, kind: input, shape index: {}]
  %s3 = inlined_call_operand.hbm [shape: bf16[512,256], index: 3, kind: input, shape index: {}]
  %s4 = inlined_call_operand.vmem [shape: f32[1,256], index: 4, kind: input, shape index: {}]
  %s5 = inlined_call_operand.vmem [shape: bf16[256,32], index: 5, kind: input, shape index: {}]
  %s6 = inlined_call_operand.vmem [shape: f32[1,32], index: 6, kind: input, shape index: {}]
  %s7 = inlined_call_operand.hbm [shape: f32[8,32], index: 7, kind: output, shape index: {}]
  %s8 = sld [smem:[#allocation0]]
  $region42: #{text_emb_discriminator_forward.1} parent=0
    _
  %s10 = ssub.s32 1, %s8
  %s11 = scalar_select 0, %s10, %s8
  $region1: #{text_emb_discriminator_forward.1} parent=0
    #allocation2 [shape = 'u8[262144]{0}', space=vmem, size = 0x40000, scoped, tag = 'input window, operand 3, single buffered']
    #allocation3 [shape = 's32[1]{0}', space=sflag, size = 0x4, scoped, tag = 'scoped memory for text_emb_discriminator_forward.1']
    #allocation4 [shape = 's32[1]{0}', space=sflag, size = 0x4, scoped, tag = 'scoped memory for text_emb_discriminator_forward.1']
    #allocation5 [shape = 'u8[4096]{0}', space=vmem, size = 0x1000, scoped, tag = 'output window, operand 0, single buffered']
    %12 = vsyncpa [#allocation3], 0
    %13 = vsyncpa [#allocation4], 0
    // Predicated region
    $region2: #{text_emb_discriminator_forward.1} parent=1 // pred_check
      _
    $region3: #{text_emb_discriminator_forward.1} parent=1 // pred_check_branch
      %15 = sbr.rel (0) target = $region5
    $region4: #{text_emb_discriminator_forward.1} parent=1 // pred_region
      _
    $region5: #{text_emb_discriminator_forward.1} parent=1 // pred_fallthru
      _
    // Predicated region
    $region6: #{text_emb_discriminator_forward.1} parent=1 // pred_check
      _
    $region7: #{text_emb_discriminator_forward.1} parent=1 // pred_check_branch
      %17 = sbr.rel (0) target = $region9
    $region8: #{text_emb_discriminator_forward.1} parent=1 // pred_region
      _
    $region9: #{text_emb_discriminator_forward.1} parent=1 // pred_fallthru
      _
    // Predicated region
    $region10: #{text_emb_discriminator_forward.1} parent=1 // pred_check
      _
    $region11: #{text_emb_discriminator_forward.1} parent=1 // pred_check_branch
      %19 = sbr.rel (0) target = $region13
    $region12: #{text_emb_discriminator_forward.1} parent=1 // pred_region
      _
    $region13: #{text_emb_discriminator_forward.1} parent=1 // pred_fallthru
      _
    // Predicated region
    $region14: #{text_emb_discriminator_forward.1} parent=1 // pred_check
      _
    $region15: #{text_emb_discriminator_forward.1} parent=1 // pred_check_branch
      %21 = sbr.rel (0) target = $region17
    $region16: #{text_emb_discriminator_forward.1} parent=1 // pred_region
      %23 = vsyncadd [#allocation3], 0
      %s24 = sshll.u32 %s3, 4
      %s25 = int_to_ptr.hbm [resolvable:$true] %s24
      %s26 = sshll.u32 [#allocation2], 4
      %s27 = int_to_ptr.vmem [resolvable:$true] %s26
      %32 = dma.hbm_to_vmem [thread:$0]  %s25, 8192, %s27, [#allocation3], 128, 128, 8
    $region17: #{text_emb_discriminator_forward.1} parent=1 // pred_fallthru
      _
    // Predicated region
    $region18: #{text_emb_discriminator_forward.1} parent=1 // pred_check
      _
    $region19: #{text_emb_discriminator_forward.1} parent=1 // pred_check_branch
      %34 = sbr.rel (0) target = $region21
    $region20: #{text_emb_discriminator_forward.1} parent=1 // pred_region
      _
    $region21: #{text_emb_discriminator_forward.1} parent=1 // pred_fallthru
      _
    // Predicated region
    $region22: #{text_emb_discriminator_forward.1} parent=1 // pred_check
      _
    $region23: #{text_emb_discriminator_forward.1} parent=1 // pred_check_branch
      %36 = sbr.rel (0) target = $region25
    $region24: #{text_emb_discriminator_forward.1} parent=1 // pred_region
      _
    $region25: #{text_emb_discriminator_forward.1} parent=1 // pred_fallthru
      _
    // Predicated region
    $region26: #{text_emb_discriminator_forward.1} parent=1 // pred_check
      _
    $region27: #{text_emb_discriminator_forward.1} parent=1 // pred_check_branch
      %38 = sbr.rel (0) target = $region29
    $region28: #{text_emb_discriminator_forward.1} parent=1 // pred_region
      _
    $region29: #{text_emb_discriminator_forward.1} parent=1 // pred_fallthru
      _
    // Predicated region
    $region30: #{text_emb_discriminator_forward.1} parent=1 // pred_check
      _
    $region31: #{text_emb_discriminator_forward.1} parent=1 // pred_check_branch
      %40 = sbr.rel (0) target = $region33
    $region32: #{text_emb_discriminator_forward.1} parent=1 // pred_region
      %42 = dma.done [#allocation3], 8192
    $region33: #{text_emb_discriminator_forward.1} parent=1 // pred_fallthru
      _
    %v44 = vld [vmem:[%s0] sm:$0xff]
    %v45 = vpack.c.bf16 %v44, %v44
    %v46 = vld [vmem:[%s1] sm:$0xff]
    %v47 = vld [vmem:[%s1 + $0x8] sm:$0xff]
    %v48 = vld [vmem:[%s1 + $0x10] sm:$0xff]
    %v49 = vld [vmem:[%s1 + $0x18] sm:$0xff]
    %v50 = vld [vmem:[%s1 + $0x20] sm:$0xff]
    %v51 = vld [vmem:[%s1 + $0x28] sm:$0xff]
    %v52 = vld [vmem:[%s1 + $0x30] sm:$0xff]
    %v53 = vld [vmem:[%s1 + $0x38] sm:$0xff]
    %v54 = vld [vmem:[%s2] sm:$0xf]
    %v56 = vperm.slane %v54, 0
    %v57 = vperm.slane %v54, 1
    %v58 = vperm.slane %v54, 2
    %v59 = vperm.slane %v54, 3
    %v72 = vunpack.c.l.b16 %v46
    %v73 = vunpack.c.h.b16 %v46
    %v74 = vunpack.c.l.b16 %v47
    %v75 = vunpack.c.h.b16 %v47
    %v76 = vunpack.c.l.b16 %v48
    %v77 = vunpack.c.h.b16 %v48
    %v78 = vunpack.c.l.b16 %v49
    %v79 = vunpack.c.h.b16 %v49
    %v80 = vunpack.c.l.b16 %v50
    %v81 = vunpack.c.h.b16 %v50
    %v82 = vunpack.c.l.b16 %v51
    %v83 = vunpack.c.h.b16 %v51
    %v84 = vunpack.c.l.b16 %v52
    %v85 = vunpack.c.h.b16 %v52
    %v86 = vunpack.c.l.b16 %v53
    %v87 = vunpack.c.h.b16 %v53
    %v88 = vpack.c.b16 %v76, %v72
    %v89 = vpack.c.b16 %v77, %v73
    %v90 = vpack.c.b16 %v78, %v74
    %v91 = vpack.c.b16 %v79, %v75
    %v92 = vpack.c.b16 %v84, %v80
    %v93 = vpack.c.b16 %v85, %v81
    %v94 = vpack.c.b16 %v86, %v82
    %v95 = vpack.c.b16 %v87, %v83
    %vm104 = vcmask 261120
    %v106 = vsel %vm104, %v45, 0
    %108 = vmatpush.bf16.msra.mxu0 0
    %109 = vmatpush.bf16.msra.mxu0 0
    %110 = vmatpush.bf16.msra.mxu0 0
    %111 = vmatpush.bf16.msra.mxu0 0
    %112 = vmatpush.bf16.msra.mxu0 0
    %113 = vmatpush.bf16.msra.mxu0 0
    %114 = vmatpush.bf16.msra.mxu0 %v92
    %115 = vmatpush.bf16.msra.mxu0 %v88
    %116 = vmatmul.bf16.gmra.mxu0 %v106
    %v117 = vpop.f32.mrf.mxu0
    %v118 = vadd.f32 %v56, %v117
    %v119 = vpop.f32.mrf.mxu0
    %120 = vdwg.mxu0
    %121 = vmatpush.bf16.msra.mxu0 0
    %122 = vmatpush.bf16.msra.mxu0 0
    %123 = vmatpush.bf16.msra.mxu0 0
    %124 = vmatpush.bf16.msra.mxu0 0
    %125 = vmatpush.bf16.msra.mxu0 0
    %126 = vmatpush.bf16.msra.mxu0 0
    %127 = vmatpush.bf16.msra.mxu0 %v93
    %128 = vmatpush.bf16.msra.mxu0 %v89
    %129 = vmatmul.bf16.gmra.mxu0 %v106
    %v130 = vpop.f32.mrf.mxu0
    %v131 = vadd.f32 %v57, %v130
    %v132 = vpop.f32.mrf.mxu0
    %133 = vdwg.mxu0
    %134 = vmatpush.bf16.msra.mxu0 0
    %135 = vmatpush.bf16.msra.mxu0 0
    %136 = vmatpush.bf16.msra.mxu0 0
    %137 = vmatpush.bf16.msra.mxu0 0
    %138 = vmatpush.bf16.msra.mxu0 0
    %139 = vmatpush.bf16.msra.mxu0 0
    %140 = vmatpush.bf16.msra.mxu0 %v94
    %141 = vmatpush.bf16.msra.mxu0 %v90
    %142 = vmatmul.bf16.gmra.mxu0 %v106
    %v143 = vpop.f32.mrf.mxu0
    %v144 = vadd.f32 %v58, %v143
    %v145 = vpop.f32.mrf.mxu0
    %146 = vdwg.mxu0
    %147 = vmatpush.bf16.msra.mxu0 0
    %148 = vmatpush.bf16.msra.mxu0 0
    %149 = vmatpush.bf16.msra.mxu0 0
    %150 = vmatpush.bf16.msra.mxu0 0
    %151 = vmatpush.bf16.msra.mxu0 0
    %152 = vmatpush.bf16.msra.mxu0 0
    %153 = vmatpush.bf16.msra.mxu0 %v95
    %154 = vmatpush.bf16.msra.mxu0 %v91
    %155 = vmatmul.bf16.gmra.mxu0 %v106
    %v156 = vpop.f32.mrf.mxu0
    %v157 = vadd.f32 %v59, %v156
    %v158 = vpop.f32.mrf.mxu0
    %159 = vdwg.mxu0
    %v160 = vpack.c.bf16 %v131, %v118
    %v161 = vpack.c.bf16 %v157, %v144
    %v162 = vunpack.c.l.bf16 %v160
    %v163 = vunpack.c.h.bf16 %v160
    %v164 = vunpack.c.l.bf16 %v161
    %v165 = vunpack.c.h.bf16 %v161
    %vm166 = vcmp.gt.f32.partialorder %v162, 0.0
    %vm167 = vcmp.gt.f32.partialorder %v163, 0.0
    %vm168 = vcmp.gt.f32.partialorder %v164, 0.0
    %vm169 = vcmp.gt.f32.partialorder %v165, 0.0
    %v170 = vmul.f32 %v162, 0.20019531
    %v171 = vmul.f32 %v163, 0.20019531
    %v172 = vmul.f32 %v164, 0.20019531
    %v173 = vmul.f32 %v165, 0.20019531
    %v174 = vpack.c.bf16 %v171, %v170
    %v175 = vpack.c.bf16 %v173, %v172
    %vm176 = vmpackc.low %vm167, %vm166
    %vm177 = vmpackc.low %vm169, %vm168
    %v178 = vsel %vm176, %v160, %v174
    %v179 = vsel %vm177, %v161, %v175
    %v180 = vld [vmem:[#allocation2] sm:$0xff]
    %v181 = vld [vmem:[#allocation2 + $0x8] sm:$0xff]
    %v182 = vld [vmem:[#allocation2 + $0x10] sm:$0xff]
    %v183 = vld [vmem:[#allocation2 + $0x18] sm:$0xff]
    %v184 = vld [vmem:[#allocation2 + $0x20] sm:$0xff]
    %v185 = vld [vmem:[#allocation2 + $0x28] sm:$0xff]
    %v186 = vld [vmem:[#allocation2 + $0x30] sm:$0xff]
    %v187 = vld [vmem:[#allocation2 + $0x38] sm:$0xff]
    %v188 = vld [vmem:[#allocation2 + $0x40] sm:$0xff]
    %v189 = vld [vmem:[#allocation2 + $0x48] sm:$0xff]
    %v190 = vld [vmem:[#allocation2 + $0x50] sm:$0xff]
    %v191 = vld [vmem:[#allocation2 + $0x58] sm:$0xff]
    %v192 = vld [vmem:[#allocation2 + $0x60] sm:$0xff]
    %v193 = vld [vmem:[#allocation2 + $0x68] sm:$0xff]
    %v194 = vld [vmem:[#allocation2 + $0x70] sm:$0xff]
    %v195 = vld [vmem:[#allocation2 + $0x78] sm:$0xff]
    %v196 = vld [vmem:[#allocation2 + $0x80] sm:$0xff]
    %v197 = vld [vmem:[#allocation2 + $0x88] sm:$0xff]
    %v198 = vld [vmem:[#allocation2 + $0x90] sm:$0xff]
    %v199 = vld [vmem:[#allocation2 + $0x98] sm:$0xff]
    %v200 = vld [vmem:[#allocation2 + $0xa0] sm:$0xff]
    %v201 = vld [vmem:[#allocation2 + $0xa8] sm:$0xff]
    %v202 = vld [vmem:[#allocation2 + $0xb0] sm:$0xff]
    %v203 = vld [vmem:[#allocation2 + $0xb8] sm:$0xff]
    %v204 = vld [vmem:[#allocation2 + $0xc0] sm:$0xff]
    %v205 = vld [vmem:[#allocation2 + $0xc8] sm:$0xff]
    %v206 = vld [vmem:[#allocation2 + $0xd0] sm:$0xff]
    %v207 = vld [vmem:[#allocation2 + $0xd8] sm:$0xff]
    %v208 = vld [vmem:[#allocation2 + $0xe0] sm:$0xff]
    %v209 = vld [vmem:[#allocation2 + $0xe8] sm:$0xff]
    %v210 = vld [vmem:[#allocation2 + $0xf0] sm:$0xff]
    %v211 = vld [vmem:[#allocation2 + $0xf8] sm:$0xff]
    %v212 = vld [vmem:[#allocation2 + $0x100] sm:$0xff]
    %v213 = vld [vmem:[#allocation2 + $0x108] sm:$0xff]
    %v214 = vld [vmem:[#allocation2 + $0x110] sm:$0xff]
    %v215 = vld [vmem:[#allocation2 + $0x118] sm:$0xff]
    %v216 = vld [vmem:[#allocation2 + $0x120] sm:$0xff]
    %v217 = vld [vmem:[#allocation2 + $0x128] sm:$0xff]
    %v218 = vld [vmem:[#allocation2 + $0x130] sm:$0xff]
    %v219 = vld [vmem:[#allocation2 + $0x138] sm:$0xff]
    %v220 = vld [vmem:[#allocation2 + $0x140] sm:$0xff]
    %v221 = vld [vmem:[#allocation2 + $0x148] sm:$0xff]
    %v222 = vld [vmem:[#allocation2 + $0x150] sm:$0xff]
    %v223 = vld [vmem:[#allocation2 + $0x158] sm:$0xff]
    %v224 = vld [vmem:[#allocation2 + $0x160] sm:$0xff]
    %v225 = vld [vmem:[#allocation2 + $0x168] sm:$0xff]
    %v226 = vld [vmem:[#allocation2 + $0x170] sm:$0xff]
    %v227 = vld [vmem:[#allocation2 + $0x178] sm:$0xff]
    %v228 = vld [vmem:[#allocation2 + $0x180] sm:$0xff]
    %v229 = vld [vmem:[#allocation2 + $0x188] sm:$0xff]
    %v230 = vld [vmem:[#allocation2 + $0x190] sm:$0xff]
    %v231 = vld [vmem:[#allocation2 + $0x198] sm:$0xff]
    %v232 = vld [vmem:[#allocation2 + $0x1a0] sm:$0xff]
    %v233 = vld [vmem:[#allocation2 + $0x1a8] sm:$0xff]
    %v234 = vld [vmem:[#allocation2 + $0x1b0] sm:$0xff]
    %v235 = vld [vmem:[#allocation2 + $0x1b8] sm:$0xff]
    %v236 = vld [vmem:[#allocation2 + $0x1c0] sm:$0xff]
    %v237 = vld [vmem:[#allocation2 + $0x1c8] sm:$0xff]
    %v238 = vld [vmem:[#allocation2 + $0x1d0] sm:$0xff]
    %v239 = vld [vmem:[#allocation2 + $0x1d8] sm:$0xff]
    %v240 = vld [vmem:[#allocation2 + $0x1e0] sm:$0xff]
    %v241 = vld [vmem:[#allocation2 + $0x1e8] sm:$0xff]
    %v242 = vld [vmem:[#allocation2 + $0x1f0] sm:$0xff]
    %v243 = vld [vmem:[#allocation2 + $0x1f8] sm:$0xff]
    %v244 = vld [vmem:[%s4] sm:$0x3]
    %v246 = vperm.slane %v244, 0
    %v247 = vperm.slane %v244, 1
    %v252 = vunpack.c.l.b16 %v178
    %v253 = vunpack.c.h.b16 %v178
    %v254 = vunpack.c.l.b16 %v179
    %v255 = vunpack.c.h.b16 %v179
    %v256 = vpack.c.b16 %v252, %v252
    %v257 = vpack.c.b16 %v253, %v253
    %v258 = vpack.c.b16 %v254, %v254
    %v259 = vpack.c.b16 %v255, %v255
    %v328 = vunpack.c.l.b16 %v180
    %v329 = vunpack.c.h.b16 %v180
    %v330 = vunpack.c.l.b16 %v181
    %v331 = vunpack.c.h.b16 %v181
    %v332 = vunpack.c.l.b16 %v182
    %v333 = vunpack.c.h.b16 %v182
    %v334 = vunpack.c.l.b16 %v183
    %v335 = vunpack.c.h.b16 %v183
    %v336 = vunpack.c.l.b16 %v184
    %v337 = vunpack.c.h.b16 %v184
    %v338 = vunpack.c.l.b16 %v185
    %v339 = vunpack.c.h.b16 %v185
    %v340 = vunpack.c.l.b16 %v186
    %v341 = vunpack.c.h.b16 %v186
    %v342 = vunpack.c.l.b16 %v187
    %v343 = vunpack.c.h.b16 %v187
    %v344 = vunpack.c.l.b16 %v188
    %v345 = vunpack.c.h.b16 %v188
    %v346 = vunpack.c.l.b16 %v189
    %v347 = vunpack.c.h.b16 %v189
    %v348 = vunpack.c.l.b16 %v190
    %v349 = vunpack.c.h.b16 %v190
    %v350 = vunpack.c.l.b16 %v191
    %v351 = vunpack.c.h.b16 %v191
    %v352 = vunpack.c.l.b16 %v192
    %v353 = vunpack.c.h.b16 %v192
    %v354 = vunpack.c.l.b16 %v193
    %v355 = vunpack.c.h.b16 %v193
    %v356 = vunpack.c.l.b16 %v194
    %v357 = vunpack.c.h.b16 %v194
    %v358 = vunpack.c.l.b16 %v195
    %v359 = vunpack.c.h.b16 %v195
    %v360 = vunpack.c.l.b16 %v196
    %v361 = vunpack.c.h.b16 %v196
    %v362 = vunpack.c.l.b16 %v197
    %v363 = vunpack.c.h.b16 %v197
    %v364 = vunpack.c.l.b16 %v198
    %v365 = vunpack.c.h.b16 %v198
    %v366 = vunpack.c.l.b16 %v199
    %v367 = vunpack.c.h.b16 %v199
    %v368 = vunpack.c.l.b16 %v200
    %v369 = vunpack.c.h.b16 %v200
    %v370 = vunpack.c.l.b16 %v201
    %v371 = vunpack.c.h.b16 %v201
    %v372 = vunpack.c.l.b16 %v202
    %v373 = vunpack.c.h.b16 %v202
    %v374 = vunpack.c.l.b16 %v203
    %v375 = vunpack.c.h.b16 %v203
    %v376 = vunpack.c.l.b16 %v204
    %v377 = vunpack.c.h.b16 %v204
    %v378 = vunpack.c.l.b16 %v205
    %v379 = vunpack.c.h.b16 %v205
    %v380 = vunpack.c.l.b16 %v206
    %v381 = vunpack.c.h.b16 %v206
    %v382 = vunpack.c.l.b16 %v207
    %v383 = vunpack.c.h.b16 %v207
    %v384 = vunpack.c.l.b16 %v208
    %v385 = vunpack.c.h.b16 %v208
    %v386 = vunpack.c.l.b16 %v209
    %v387 = vunpack.c.h.b16 %v209
    %v388 = vunpack.c.l.b16 %v210
    %v389 = vunpack.c.h.b16 %v210
    %v390 = vunpack.c.l.b16 %v211
    %v391 = vunpack.c.h.b16 %v211
    %v392 = vunpack.c.l.b16 %v212
    %v393 = vunpack.c.h.b16 %v212
    %v394 = vunpack.c.l.b16 %v213
    %v395 = vunpack.c.h.b16 %v213
    %v396 = vunpack.c.l.b16 %v214
    %v397 = vunpack.c.h.b16 %v214
    %v398 = vunpack.c.l.b16 %v215
    %v399 = vunpack.c.h.b16 %v215
    %v400 = vunpack.c.l.b16 %v216
    %v401 = vunpack.c.h.b16 %v216
    %v402 = vunpack.c.l.b16 %v217
    %v403 = vunpack.c.h.b16 %v217
    %v404 = vunpack.c.l.b16 %v218
    %v405 = vunpack.c.h.b16 %v218
    %v406 = vunpack.c.l.b16 %v219
    %v407 = vunpack.c.h.b16 %v219
    %v408 = vunpack.c.l.b16 %v220
    %v409 = vunpack.c.h.b16 %v220
    %v410 = vunpack.c.l.b16 %v221
    %v411 = vunpack.c.h.b16 %v221
    %v412 = vunpack.c.l.b16 %v222
    %v413 = vunpack.c.h.b16 %v222
    %v414 = vunpack.c.l.b16 %v223
    %v415 = vunpack.c.h.b16 %v223
    %v416 = vunpack.c.l.b16 %v224
    %v417 = vunpack.c.h.b16 %v224
    %v418 = vunpack.c.l.b16 %v225
    %v419 = vunpack.c.h.b16 %v225
    %v420 = vunpack.c.l.b16 %v226
    %v421 = vunpack.c.h.b16 %v226
    %v422 = vunpack.c.l.b16 %v227
    %v423 = vunpack.c.h.b16 %v227
    %v424 = vunpack.c.l.b16 %v228
    %v425 = vunpack.c.h.b16 %v228
    %v426 = vunpack.c.l.b16 %v229
    %v427 = vunpack.c.h.b16 %v229
    %v428 = vunpack.c.l.b16 %v230
    %v429 = vunpack.c.h.b16 %v230
    %v430 = vunpack.c.l.b16 %v231
    %v431 = vunpack.c.h.b16 %v231
    %v432 = vunpack.c.l.b16 %v232
    %v433 = vunpack.c.h.b16 %v232
    %v434 = vunpack.c.l.b16 %v233
    %v435 = vunpack.c.h.b16 %v233
    %v436 = vunpack.c.l.b16 %v234
    %v437 = vunpack.c.h.b16 %v234
    %v438 = vunpack.c.l.b16 %v235
    %v439 = vunpack.c.h.b16 %v235
    %v440 = vunpack.c.l.b16 %v236
    %v441 = vunpack.c.h.b16 %v236
    %v442 = vunpack.c.l.b16 %v237
    %v443 = vunpack.c.h.b16 %v237
    %v444 = vunpack.c.l.b16 %v238
    %v445 = vunpack.c.h.b16 %v238
    %v446 = vunpack.c.l.b16 %v239
    %v447 = vunpack.c.h.b16 %v239
    %v448 = vunpack.c.l.b16 %v240
    %v449 = vunpack.c.h.b16 %v240
    %v450 = vunpack.c.l.b16 %v241
    %v451 = vunpack.c.h.b16 %v241
    %v452 = vunpack.c.l.b16 %v242
    %v453 = vunpack.c.h.b16 %v242
    %v454 = vunpack.c.l.b16 %v243
    %v455 = vunpack.c.h.b16 %v243
    %v456 = vpack.c.b16 %v330, %v328
    %v457 = vpack.c.b16 %v331, %v329
    %v458 = vpack.c.b16 %v334, %v332
    %v459 = vpack.c.b16 %v335, %v333
    %v460 = vpack.c.b16 %v338, %v336
    %v461 = vpack.c.b16 %v339, %v337
    %v462 = vpack.c.b16 %v342, %v340
    %v463 = vpack.c.b16 %v343, %v341
    %v464 = vpack.c.b16 %v346, %v344
    %v465 = vpack.c.b16 %v347, %v345
    %v466 = vpack.c.b16 %v350, %v348
    %v467 = vpack.c.b16 %v351, %v349
    %v468 = vpack.c.b16 %v354, %v352
    %v469 = vpack.c.b16 %v355, %v353
    %v470 = vpack.c.b16 %v358, %v356
    %v471 = vpack.c.b16 %v359, %v357
    %v472 = vpack.c.b16 %v362, %v360
    %v473 = vpack.c.b16 %v363, %v361
    %v474 = vpack.c.b16 %v366, %v364
    %v475 = vpack.c.b16 %v367, %v365
    %v476 = vpack.c.b16 %v370, %v368
    %v477 = vpack.c.b16 %v371, %v369
    %v478 = vpack.c.b16 %v374, %v372
    %v479 = vpack.c.b16 %v375, %v373
    %v480 = vpack.c.b16 %v378, %v376
    %v481 = vpack.c.b16 %v379, %v377
    %v482 = vpack.c.b16 %v382, %v380
    %v483 = vpack.c.b16 %v383, %v381
    %v484 = vpack.c.b16 %v386, %v384
    %v485 = vpack.c.b16 %v387, %v385
    %v486 = vpack.c.b16 %v390, %v388
    %v487 = vpack.c.b16 %v391, %v389
    %v488 = vpack.c.b16 %v394, %v392
    %v489 = vpack.c.b16 %v395, %v393
    %v490 = vpack.c.b16 %v398, %v396
    %v491 = vpack.c.b16 %v399, %v397
    %v492 = vpack.c.b16 %v402, %v400
    %v493 = vpack.c.b16 %v403, %v401
    %v494 = vpack.c.b16 %v406, %v404
    %v495 = vpack.c.b16 %v407, %v405
    %v496 = vpack.c.b16 %v410, %v408
    %v497 = vpack.c.b16 %v411, %v409
    %v498 = vpack.c.b16 %v414, %v412
    %v499 = vpack.c.b16 %v415, %v413
    %v500 = vpack.c.b16 %v418, %v416
    %v501 = vpack.c.b16 %v419, %v417
    %v502 = vpack.c.b16 %v422, %v420
    %v503 = vpack.c.b16 %v423, %v421
    %v504 = vpack.c.b16 %v426, %v424
    %v505 = vpack.c.b16 %v427, %v425
    %v506 = vpack.c.b16 %v430, %v428
    %v507 = vpack.c.b16 %v431, %v429
    %v508 = vpack.c.b16 %v434, %v432
    %v509 = vpack.c.b16 %v435, %v433
    %v510 = vpack.c.b16 %v438, %v436
    %v511 = vpack.c.b16 %v439, %v437
    %v512 = vpack.c.b16 %v442, %v440
    %v513 = vpack.c.b16 %v443, %v441
    %v514 = vpack.c.b16 %v446, %v444
    %v515 = vpack.c.b16 %v447, %v445
    %v516 = vpack.c.b16 %v450, %v448
    %v517 = vpack.c.b16 %v451, %v449
    %v518 = vpack.c.b16 %v454, %v452
    %v519 = vpack.c.b16 %v455, %v453
    %584 = vmatpush.bf16.msra.mxu0 %v470
    %585 = vmatpush.bf16.msra.mxu0 %v468
    %586 = vmatpush.bf16.msra.mxu0 %v466
    %587 = vmatpush.bf16.msra.mxu0 %v464
    %588 = vmatpush.bf16.msra.mxu0 %v462
    %589 = vmatpush.bf16.msra.mxu0 %v460
    %590 = vmatpush.bf16.msra.mxu0 %v458
    %591 = vmatpush.bf16.msra.mxu0 %v456
    %592 = vmatmul.bf16.gmra.mxu0 %v256
    %v593 = vpop.f32.mrf.mxu0
    %v594 = vadd.f32 %v246, %v593
    %v595 = vpop.f32.mrf.mxu0
    %596 = vdwg.mxu0
    %597 = vmatpush.bf16.msra.mxu0 %v486
    %598 = vmatpush.bf16.msra.mxu0 %v484
    %599 = vmatpush.bf16.msra.mxu0 %v482
    %600 = vmatpush.bf16.msra.mxu0 %v480
    %601 = vmatpush.bf16.msra.mxu0 %v478
    %602 = vmatpush.bf16.msra.mxu0 %v476
    %603 = vmatpush.bf16.msra.mxu0 %v474
    %604 = vmatpush.bf16.msra.mxu0 %v472
    %605 = vmatmul.bf16.gmra.mxu0 %v257
    %v606 = vpop.f32.mrf.mxu0
    %v607 = vadd.f32 %v594, %v606
    %v608 = vpop.f32.mrf.mxu0
    %609 = vdwg.mxu0
    %610 = vmatpush.bf16.msra.mxu0 %v502
    %611 = vmatpush.bf16.msra.mxu0 %v500
    %612 = vmatpush.bf16.msra.mxu0 %v498
    %613 = vmatpush.bf16.msra.mxu0 %v496
    %614 = vmatpush.bf16.msra.mxu0 %v494
    %615 = vmatpush.bf16.msra.mxu0 %v492
    %616 = vmatpush.bf16.msra.mxu0 %v490
    %617 = vmatpush.bf16.msra.mxu0 %v488
    %618 = vmatmul.bf16.gmra.mxu0 %v258
    %v619 = vpop.f32.mrf.mxu0
    %v620 = vadd.f32 %v607, %v619
    %v621 = vpop.f32.mrf.mxu0
    %622 = vdwg.mxu0
    %623 = vmatpush.bf16.msra.mxu0 %v518
    %624 = vmatpush.bf16.msra.mxu0 %v516
    %625 = vmatpush.bf16.msra.mxu0 %v514
    %626 = vmatpush.bf16.msra.mxu0 %v512
    %627 = vmatpush.bf16.msra.mxu0 %v510
    %628 = vmatpush.bf16.msra.mxu0 %v508
    %629 = vmatpush.bf16.msra.mxu0 %v506
    %630 = vmatpush.bf16.msra.mxu0 %v504
    %631 = vmatmul.bf16.gmra.mxu0 %v259
    %v632 = vpop.f32.mrf.mxu0
    %v633 = vadd.f32 %v620, %v632
    %v634 = vpop.f32.mrf.mxu0
    %635 = vdwg.mxu0
    %636 = vmatpush.bf16.msra.mxu0 %v471
    %637 = vmatpush.bf16.msra.mxu0 %v469
    %638 = vmatpush.bf16.msra.mxu0 %v467
    %639 = vmatpush.bf16.msra.mxu0 %v465
    %640 = vmatpush.bf16.msra.mxu0 %v463
    %641 = vmatpush.bf16.msra.mxu0 %v461
    %642 = vmatpush.bf16.msra.mxu0 %v459
    %643 = vmatpush.bf16.msra.mxu0 %v457
    %644 = vmatmul.bf16.gmra.mxu0 %v256
    %v645 = vpop.f32.mrf.mxu0
    %v646 = vadd.f32 %v247, %v645
    %v647 = vpop.f32.mrf.mxu0
    %648 = vdwg.mxu0
    %649 = vmatpush.bf16.msra.mxu0 %v487
    %650 = vmatpush.bf16.msra.mxu0 %v485
    %651 = vmatpush.bf16.msra.mxu0 %v483
    %652 = vmatpush.bf16.msra.mxu0 %v481
    %653 = vmatpush.bf16.msra.mxu0 %v479
    %654 = vmatpush.bf16.msra.mxu0 %v477
    %655 = vmatpush.bf16.msra.mxu0 %v475
    %656 = vmatpush.bf16.msra.mxu0 %v473
    %657 = vmatmul.bf16.gmra.mxu0 %v257
    %v658 = vpop.f32.mrf.mxu0
    %v659 = vadd.f32 %v646, %v658
    %v660 = vpop.f32.mrf.mxu0
    %661 = vdwg.mxu0
    %662 = vmatpush.bf16.msra.mxu0 %v503
    %663 = vmatpush.bf16.msra.mxu0 %v501
    %664 = vmatpush.bf16.msra.mxu0 %v499
    %665 = vmatpush.bf16.msra.mxu0 %v497
    %666 = vmatpush.bf16.msra.mxu0 %v495
    %667 = vmatpush.bf16.msra.mxu0 %v493
    %668 = vmatpush.bf16.msra.mxu0 %v491
    %669 = vmatpush.bf16.msra.mxu0 %v489
    %670 = vmatmul.bf16.gmra.mxu0 %v258
    %v671 = vpop.f32.mrf.mxu0
    %v672 = vadd.f32 %v659, %v671
    %v673 = vpop.f32.mrf.mxu0
    %674 = vdwg.mxu0
    %675 = vmatpush.bf16.msra.mxu0 %v519
    %676 = vmatpush.bf16.msra.mxu0 %v517
    %677 = vmatpush.bf16.msra.mxu0 %v515
    %678 = vmatpush.bf16.msra.mxu0 %v513
    %679 = vmatpush.bf16.msra.mxu0 %v511
    %680 = vmatpush.bf16.msra.mxu0 %v509
    %681 = vmatpush.bf16.msra.mxu0 %v507
    %682 = vmatpush.bf16.msra.mxu0 %v505
    %683 = vmatmul.bf16.gmra.mxu0 %v259
    %v684 = vpop.f32.mrf.mxu0
    %v685 = vadd.f32 %v672, %v684
    %v686 = vpop.f32.mrf.mxu0
    %687 = vdwg.mxu0
    %v688 = vpack.c.bf16 %v685, %v633
    %v689 = vunpack.c.l.bf16 %v688
    %v690 = vunpack.c.h.bf16 %v688
    %vm691 = vcmp.gt.f32.partialorder %v689, 0.0
    %vm692 = vcmp.gt.f32.partialorder %v690, 0.0
    %v693 = vmul.f32 %v689, 0.20019531
    %v694 = vmul.f32 %v690, 0.20019531
    %v695 = vpack.c.bf16 %v694, %v693
    %vm696 = vmpackc.low %vm692, %vm691
    %v697 = vsel %vm696, %v688, %v695
    %v698 = vld [vmem:[%s5] sm:$0xf]
    %v699 = vld [vmem:[%s5 + $0x4] sm:$0xf]
    %v700 = vld [vmem:[%s5 + $0x8] sm:$0xf]
    %v701 = vld [vmem:[%s5 + $0xc] sm:$0xf]
    %v702 = vld [vmem:[%s5 + $0x10] sm:$0xf]
    %v703 = vld [vmem:[%s5 + $0x14] sm:$0xf]
    %v704 = vld [vmem:[%s5 + $0x18] sm:$0xf]
    %v705 = vld [vmem:[%s5 + $0x1c] sm:$0xf]
    %v706 = vld [vmem:[%s5 + $0x20] sm:$0xf]
    %v707 = vld [vmem:[%s5 + $0x24] sm:$0xf]
    %v708 = vld [vmem:[%s5 + $0x28] sm:$0xf]
    %v709 = vld [vmem:[%s5 + $0x2c] sm:$0xf]
    %v710 = vld [vmem:[%s5 + $0x30] sm:$0xf]
    %v711 = vld [vmem:[%s5 + $0x34] sm:$0xf]
    %v712 = vld [vmem:[%s5 + $0x38] sm:$0xf]
    %v713 = vld [vmem:[%s5 + $0x3c] sm:$0xf]
    %v714 = vld [vmem:[%s5 + $0x40] sm:$0xf]
    %v715 = vld [vmem:[%s5 + $0x44] sm:$0xf]
    %v716 = vld [vmem:[%s5 + $0x48] sm:$0xf]
    %v717 = vld [vmem:[%s5 + $0x4c] sm:$0xf]
    %v718 = vld [vmem:[%s5 + $0x50] sm:$0xf]
    %v719 = vld [vmem:[%s5 + $0x54] sm:$0xf]
    %v720 = vld [vmem:[%s5 + $0x58] sm:$0xf]
    %v721 = vld [vmem:[%s5 + $0x5c] sm:$0xf]
    %v722 = vld [vmem:[%s5 + $0x60] sm:$0xf]
    %v723 = vld [vmem:[%s5 + $0x64] sm:$0xf]
    %v724 = vld [vmem:[%s5 + $0x68] sm:$0xf]
    %v725 = vld [vmem:[%s5 + $0x6c] sm:$0xf]
    %v726 = vld [vmem:[%s5 + $0x70] sm:$0xf]
    %v727 = vld [vmem:[%s5 + $0x74] sm:$0xf]
    %v728 = vld [vmem:[%s5 + $0x78] sm:$0xf]
    %v729 = vld [vmem:[%s5 + $0x7c] sm:$0xf]
    %v730 = vld [vmem:[%s6] sm:$0x1]
    %v732 = vperm.slane %v730, 0
    %v735 = vunpack.c.l.b16 %v697
    %v736 = vunpack.c.h.b16 %v697
    %v737 = vpack.c.b16 %v735, %v735
    %v738 = vpack.c.b16 %v736, %v736
    %v773 = vunpack.c.l.b16 %v698
    %v774 = vunpack.c.l.b16 %v699
    %v775 = vunpack.c.l.b16 %v700
    %v776 = vunpack.c.l.b16 %v701
    %v777 = vunpack.c.l.b16 %v702
    %v778 = vunpack.c.l.b16 %v703
    %v779 = vunpack.c.l.b16 %v704
    %v780 = vunpack.c.l.b16 %v705
    %v781 = vunpack.c.l.b16 %v706
    %v782 = vunpack.c.l.b16 %v707
    %v783 = vunpack.c.l.b16 %v708
    %v784 = vunpack.c.l.b16 %v709
    %v785 = vunpack.c.l.b16 %v710
    %v786 = vunpack.c.l.b16 %v711
    %v787 = vunpack.c.l.b16 %v712
    %v788 = vunpack.c.l.b16 %v713
    %v789 = vunpack.c.l.b16 %v714
    %v790 = vunpack.c.l.b16 %v715
    %v791 = vunpack.c.l.b16 %v716
    %v792 = vunpack.c.l.b16 %v717
    %v793 = vunpack.c.l.b16 %v718
    %v794 = vunpack.c.l.b16 %v719
    %v795 = vunpack.c.l.b16 %v720
    %v796 = vunpack.c.l.b16 %v721
    %v797 = vunpack.c.l.b16 %v722
    %v798 = vunpack.c.l.b16 %v723
    %v799 = vunpack.c.l.b16 %v724
    %v800 = vunpack.c.l.b16 %v725
    %v801 = vunpack.c.l.b16 %v726
    %v802 = vunpack.c.l.b16 %v727
    %v803 = vunpack.c.l.b16 %v728
    %v804 = vunpack.c.l.b16 %v729
    %v805 = vpack.c.b16 %v774, %v773
    %v806 = vpack.c.b16 %v776, %v775
    %v807 = vpack.c.b16 %v778, %v777
    %v808 = vpack.c.b16 %v780, %v779
    %v809 = vpack.c.b16 %v782, %v781
    %v810 = vpack.c.b16 %v784, %v783
    %v811 = vpack.c.b16 %v786, %v785
    %v812 = vpack.c.b16 %v788, %v787
    %v813 = vpack.c.b16 %v790, %v789
    %v814 = vpack.c.b16 %v792, %v791
    %v815 = vpack.c.b16 %v794, %v793
    %v816 = vpack.c.b16 %v796, %v795
    %v817 = vpack.c.b16 %v798, %v797
    %v818 = vpack.c.b16 %v800, %v799
    %v819 = vpack.c.b16 %v802, %v801
    %v820 = vpack.c.b16 %v804, %v803
    %837 = vmatpush.bf16.msra.mxu0 %v812
    %838 = vmatpush.bf16.msra.mxu0 %v811
    %839 = vmatpush.bf16.msra.mxu0 %v810
    %840 = vmatpush.bf16.msra.mxu0 %v809
    %841 = vmatpush.bf16.msra.mxu0 %v808
    %842 = vmatpush.bf16.msra.mxu0 %v807
    %843 = vmatpush.bf16.msra.mxu0 %v806
    %844 = vmatpush.bf16.msra.mxu0 %v805
    %845 = vmatmul.bf16.gmra.mxu0 %v737
    %v846 = vpop.f32.mrf.mxu0
    %v847 = vadd.f32 %v732, %v846
    %v848 = vpop.f32.mrf.mxu0
    %849 = vdwg.mxu0
    %850 = vmatpush.bf16.msra.mxu0 %v820
    %851 = vmatpush.bf16.msra.mxu0 %v819
    %852 = vmatpush.bf16.msra.mxu0 %v818
    %853 = vmatpush.bf16.msra.mxu0 %v817
    %854 = vmatpush.bf16.msra.mxu0 %v816
    %855 = vmatpush.bf16.msra.mxu0 %v815
    %856 = vmatpush.bf16.msra.mxu0 %v814
    %857 = vmatpush.bf16.msra.mxu0 %v813
    %858 = vmatmul.bf16.gmra.mxu0 %v738
    %v859 = vpop.f32.mrf.mxu0
    %v860 = vadd.f32 %v847, %v859
    %v861 = vpop.f32.mrf.mxu0
    %862 = vdwg.mxu0
    %863 = vst.msk [vmem:[#allocation5] sm:$0xff] %vm104, %v860
    // Predicated region
    $region34: #{text_emb_discriminator_forward.1} parent=1 // pred_check
      _
    $region35: #{text_emb_discriminator_forward.1} parent=1 // pred_check_branch
      %865 = sbr.rel (0) target = $region37
    $region36: #{text_emb_discriminator_forward.1} parent=1 // pred_region
      %867 = vsyncadd [#allocation4], 0
      %s869 = sshll.u32 [#allocation5], 4
      %s870 = int_to_ptr.vmem [resolvable:$true] %s869
      %s871 = sshll.u32 %s7, 4
      %s872 = int_to_ptr.hbm [resolvable:$true] %s871
      %874 = dma.vmem_to_hbm [thread:$0]  %s870, 128, %s872, [#allocation4]
    $region37: #{text_emb_discriminator_forward.1} parent=1 // pred_fallthru
      _
    // Predicated region
    $region38: #{text_emb_discriminator_forward.1} parent=1 // pred_check
      _
    $region39: #{text_emb_discriminator_forward.1} parent=1 // pred_check_branch
      %876 = sbr.rel (0) target = $region41
    $region40: #{text_emb_discriminator_forward.1} parent=1 // pred_region
      %878 = dma.done [#allocation4], 128
    $region41: #{text_emb_discriminator_forward.1} parent=1 // pred_fallthru
      _
    %879 = vsyncpa [#allocation3], 1
    %880 = vsyncpa [#allocation4], 1

</llo_original>
